<compile_context>
chip_gen: v5e
topology: v5e:2x2
jax: 0.10.0
libtpu: 0.0.40
codegen_flags: <defaults>
</compile_context>

<pallas_src>
import jax
import jax.numpy as jnp
from jax.experimental import pallas as pl
from jax.experimental.pallas import tpu as pltpu


# ---------------------------------------------------------------------------
# Kernels
# ---------------------------------------------------------------------------

def _softmax_rows(s):
    """Softmax over the last (lane) dim of a 2-D tile. Exact normalization."""
    m = jnp.max(s, axis=-1, keepdims=True)
    p = jnp.exp(s - m)
    return p / jnp.sum(p, axis=-1, keepdims=True)


def score_kernel(q_ref, enc_ref, out_ref):
    # q: (tB, H); enc: (L, tB, H) in its native layout.
    # scores[l, b] = sum_h enc[l, b, h] * q[b, h]
    scores = jnp.sum(enc_ref[...] * q_ref[...][None, :, :], axis=2)   # (L, tB)
    # Tiny in-kernel relayout (one/two vregs) instead of an HBM transpose of enc.
    out_ref[...] = _softmax_rows(jnp.transpose(scores))               # (tB, L)


def concat_kernel(hidb_ref, enc_ref, we_ref, v_ref, out_ref):
    # hidb: (tB, H) = hidden @ W_h.T + b  (hoisted to the wrapper)
    # enc : (L, tB, H) native layout
    # we  : (H, H) = W_e.T (pre-transposed to (in, out));  v: (1, H)
    enc = enc_ref[...]
    L, tB, H = enc.shape
    enc_part = jnp.dot(enc.reshape(L * tB, H), we_ref[...],
                       preferred_element_type=jnp.float32)            # (L*tB, H)
    energy = jnp.tanh(enc_part.reshape(L, tB, H) + hidb_ref[...][None, :, :])
    scores = jnp.sum(v_ref[...][None, :, :] * energy, axis=2)         # (L, tB)
    out_ref[...] = _softmax_rows(jnp.transpose(scores))               # (tB, L)


# ---------------------------------------------------------------------------
# pallas_call builder + wrapper
# ---------------------------------------------------------------------------

def _pick_tb(B, L, H, budget_bytes=4 << 20):
    """Largest batch tile that divides B, respects the (8,128) rule (tB == B or
    tB % 8 == 0), and keeps the f32 enc block within a few MiB so double-buffered
    blocks fit comfortably in scoped VMEM on v5e/v6e/v7x."""
    if L * B * H * 4 <= budget_bytes:
        return B
    for t in (512, 256, 128, 64, 32, 16, 8):
        if t < B and B % t == 0 and L * t * H * 4 <= budget_bytes:
            return t
    return B  # fallback: single block


def make_attn_call(method, L, B, H):
    tB = _pick_tb(B, L, H)
    grid = (B // tB,)

    q_spec = pl.BlockSpec((tB, H), lambda i: (i, 0))
    enc_spec = pl.BlockSpec((L, tB, H), lambda i: (0, i, 0))
    out_spec = pl.BlockSpec((tB, L), lambda i: (i, 0))

    if method in ('dot', 'general'):
        kernel = score_kernel
        in_specs = [q_spec, enc_spec]
    elif method == 'concat':
        kernel = concat_kernel
        in_specs = [q_spec, enc_spec,
                    pl.BlockSpec((H, H), lambda i: (0, 0)),
                    pl.BlockSpec((1, H), lambda i: (0, 0))]
    else:
        raise ValueError(method, 'is not an appropriate attention method.')

    return pl.pallas_call(
        kernel,
        out_shape=jax.ShapeDtypeStruct((B, L), jnp.float32),
        grid=grid,
        in_specs=in_specs,
        out_specs=out_spec,
        compiler_params=pltpu.CompilerParams(
            dimension_semantics=("parallel",),       # megacore sharding on v7x
            vmem_limit_bytes=32 * 1024 * 1024),      # above v5e's 16 MiB default
    )


def attn_forward(method, hidden, encoder_outputs, w=None, b=None, v=None):
    """hidden: (1, B, H), encoder_outputs: (L, B, H) -> (B, 1, L), matching the torch module."""
    L, B, H = encoder_outputs.shape
    f = make_attn_call(method, L, B, H)
    h2 = hidden.reshape(B, H)                        # free reshape

    if method == 'dot':
        out_bl = f(h2, encoder_outputs)
    elif method == 'general':
        # score[l,b] = enc[l,b,:] · (hidden[b] @ W) + hidden[b] · bias.  The bias term is
        # constant over l, so it cancels in the softmax and is dropped.  hidden @ W is
        # hoisted here so the kernel never DMAs the (H, H) weight.
        wh = jnp.dot(h2, w, preferred_element_type=jnp.float32)            # (B, H)
        out_bl = f(wh, encoder_outputs)
    elif method == 'concat':
        # One-time parameter prep (hoist to model init in a real per-step decoder loop).
        w_h = w[:, :H]                                # hidden half of (H, 2H) Linear weight
        w_e_t = w[:, H:].T                            # enc half, pre-transposed to (in, out)
        hidb = jnp.dot(h2, w_h.T, preferred_element_type=jnp.float32) + b  # (B, H)
        out_bl = f(hidb, encoder_outputs, w_e_t, v.reshape(1, H))
    else:
        raise ValueError(method, 'is not an appropriate attention method.')

    return out_bl[:, None, :]                        # (B, 1, L) — free reshape


# ---------------------------------------------------------------------------
# Plain-JAX reference (mirrors the PyTorch module exactly)
# ---------------------------------------------------------------------------

def ref_forward(method, hidden, enc, w=None, b=None, v=None):
    if method == 'dot':
        scores = jnp.sum(hidden * enc, axis=2)
    elif method == 'general':
        energy = enc @ w.T + b
        scores = jnp.sum(hidden * energy, axis=2)
    else:
        hid = jnp.broadcast_to(hidden, enc.shape)
        cat = jnp.concatenate([hid, enc], axis=2)
        energy = jnp.tanh(cat @ w.T + b)
        scores = jnp.sum(v * energy, axis=2)
    return jax.nn.softmax(scores.T, axis=1)[:, None, :]


if __name__ == "__main__":
    L, B, H = 8, 2, 32  # seq len, batch, hidden_size
    key = jax.random.PRNGKey(0)
    k_h, k_e, k_wg, k_bg, k_wc, k_bc, k_v = jax.random.split(key, 7)

    hidden = jax.random.normal(k_h, (1, B, H), dtype=jnp.float32)
    encoder_outputs = jax.random.normal(k_e, (L, B, H), dtype=jnp.float32)

    # torch.nn.Linear-style parameters: weight (out, in), bias (out,)
    bound_g = 1.0 / (H ** 0.5)
    w_general = jax.random.uniform(k_wg, (H, H), jnp.float32, -bound_g, bound_g)
    b_general = jax.random.uniform(k_bg, (H,), jnp.float32, -bound_g, bound_g)
    bound_c = 1.0 / ((2 * H) ** 0.5)
    w_concat = jax.random.uniform(k_wc, (H, 2 * H), jnp.float32, -bound_c, bound_c)
    b_concat = jax.random.uniform(k_bc, (H,), jnp.float32, -bound_c, bound_c)
    v_param = jax.random.normal(k_v, (H,), dtype=jnp.float32)

    ok = True
    for method, args in [
        ('dot', ()),
        ('general', (w_general, b_general)),
        ('concat', (w_concat, b_concat, v_param)),
    ]:
        out = attn_forward(method, hidden, encoder_outputs, *args)
        out = jax.block_until_ready(out)
        ref = ref_forward(method, hidden, encoder_outputs, *args)
        assert out.shape == (B, 1, L), (method, out.shape)
        if not jnp.allclose(out, ref, atol=1e-4, rtol=1e-4):
            ok = False
            print(f"mismatch for method={method}: max err "
                  f"{float(jnp.max(jnp.abs(out - ref)))}")

    if ok:
        print("KERNEL_OK")
</pallas_src>

<mosaic_0001>
module attributes {stable_mosaic.version = 11 : i64} {
  func.func @score_kernel(%arg0: i32, %arg1: memref<2x32xf32, #tpu.memory_space<vmem>>, %arg2: memref<8x2x32xf32, #tpu.memory_space<vmem>>, %arg3: memref<2x8xf32, #tpu.memory_space<vmem>>) attributes {dimension_semantics = [#tpu.dimension_semantics<parallel>], iteration_bounds = array<i64: 1>, scalar_prefetch = 0 : i64, scratch_operands = 0 : i64, tpu.core_type = #tpu.core_type<tc>, window_params = [{transform_indices = @transform_0, window_bounds = array<i64: 2, 32>}, {transform_indices = @transform_1, window_bounds = array<i64: 8, 2, 32>}, {transform_indices = @transform_2, window_bounds = array<i64: 2, 8>}]} {
    %c0 = arith.constant 0 : index
    %c0_0 = arith.constant 0 : index
    %c0_1 = arith.constant 0 : index
    %0 = vector.load %arg2[%c0, %c0_0, %c0_1] : memref<8x2x32xf32, #tpu.memory_space<vmem>>, vector<8x2x32xf32>
    %c0_2 = arith.constant 0 : index
    %c0_3 = arith.constant 0 : index
    %1 = vector.load %arg1[%c0_2, %c0_3] : memref<2x32xf32, #tpu.memory_space<vmem>>, vector<2x32xf32>
    %2 = vector.shape_cast %1 : vector<2x32xf32> to vector<1x2x32xf32>
    %3 = vector.broadcast %2 : vector<1x2x32xf32> to vector<8x2x32xf32>
    %4 = arith.mulf %0, %3 : vector<8x2x32xf32>
    %cst = arith.constant dense<0.000000e+00> : vector<8x2xf32>
    %5 = vector.multi_reduction <add>, %4, %cst [2] : vector<8x2x32xf32> to vector<8x2xf32>
    %6 = tpu.transpose %5, [1, 0] : vector<8x2xf32> -> vector<2x8xf32>
    %cst_4 = arith.constant dense<0xFF800000> : vector<2xf32>
    %7 = vector.multi_reduction <maximumf>, %6, %cst_4 [1] : vector<2x8xf32> to vector<2xf32>
    %8 = vector.shape_cast %7 : vector<2xf32> to vector<2x1xf32>
    %9 = vector.broadcast %8 : vector<2x1xf32> to vector<2x8xf32>
    %10 = arith.subf %6, %9 : vector<2x8xf32>
    %11 = math.exp %10 : vector<2x8xf32>
    %cst_5 = arith.constant dense<0.000000e+00> : vector<2xf32>
    %12 = vector.multi_reduction <add>, %11, %cst_5 [1] : vector<2x8xf32> to vector<2xf32>
    %13 = vector.shape_cast %12 : vector<2xf32> to vector<2x1xf32>
    %14 = vector.broadcast %13 : vector<2x1xf32> to vector<2x8xf32>
    %15 = arith.divf %11, %14 : vector<2x8xf32>
    %c0_6 = arith.constant 0 : index
    %c0_7 = arith.constant 0 : index
    %16 = vector.load %arg3[%c0_6, %c0_7] : memref<2x8xf32, #tpu.memory_space<vmem>>, vector<2x8xf32>
    tpu.vector_store %arg3[%c0_6, %c0_7], %15 {strides = array<i32>} : memref<2x8xf32, #tpu.memory_space<vmem>>, vector<2x8xf32>,
    return
  }
  func.func @transform_0(%arg0: i32) -> (i32, i32) {
    %c0_i32 = arith.constant 0 : i32
    %c0_i32_0 = arith.constant 0 : i32
    return %arg0, %c0_i32 : i32, i32
  }
  func.func @transform_1(%arg0: i32) -> (i32, i32, i32) {
    %c0_i32 = arith.constant 0 : i32
    %c0_i32_0 = arith.constant 0 : i32
    %c0_i32_1 = arith.constant 0 : i32
    return %c0_i32, %arg0, %c0_i32_0 : i32, i32, i32
  }
  func.func @transform_2(%arg0: i32) -> (i32, i32) {
    %c0_i32 = arith.constant 0 : i32
    %c0_i32_0 = arith.constant 0 : i32
    return %arg0, %c0_i32 : i32, i32
  }
}

</mosaic_0001>

<llo_original>
// kernel: tpu_custom_call.1
$region0: #{tpu_custom_call.1}
  #allocation0 [shape = 'u32[]', space=smem, size = 0x4, offset = 0x4, fixed_abs, tag = 'smem constant byte address 0x4 - core index']
  #allocation1 [shape = 'u32[72,128]{1,0:T(1,128)}', space=vmem, size = 0x9000, scoped, tag = 'internal scratch']
  %s0 = inlined_call_operand.hbm [shape: f32[2,32], index: 0, kind: input, shape index: {}]
  %s1 = inlined_call_operand.hbm [shape: f32[8,2,32], index: 1, kind: input, shape index: {}]
  %s2 = inlined_call_operand.hbm [shape: f32[2,8], index: 2, kind: output, shape index: {}]
  %s3 = sld [smem:[#allocation0]]
  $region26: #{tpu_custom_call.1} parent=0
    _
  %s5 = ssub.s32 1, %s3
  %s6 = scalar_select 0, %s5, %s3
  $region1: #{tpu_custom_call.1} parent=0
    #allocation2 [shape = 'u8[1024]{0}', space=vmem, size = 0x400, scoped, tag = 'input window, operand 0, single buffered']
    #allocation3 [shape = 's32[1]{0}', space=sflag, size = 0x4, scoped, tag = 'scoped memory for tpu_custom_call.1']
    #allocation4 [shape = 's32[1]{0}', space=sflag, size = 0x4, scoped, tag = 'scoped memory for tpu_custom_call.1']
    #allocation5 [shape = 'u8[8192]{0}', space=vmem, size = 0x2000, scoped, tag = 'input window, operand 1, single buffered']
    #allocation6 [shape = 's32[1]{0}', space=sflag, size = 0x4, scoped, tag = 'scoped memory for tpu_custom_call.1']
    #allocation7 [shape = 'u8[1024]{0}', space=vmem, size = 0x400, scoped, tag = 'output window, operand 0, single buffered']
    %7 = vsyncpa [#allocation3], 0
    %8 = vsyncpa [#allocation6], 0
    %9 = vsyncpa [#allocation4], 0
    // Predicated region
    $region2: #{tpu_custom_call.1} parent=1 // pred_check
      _
    $region3: #{tpu_custom_call.1} parent=1 // pred_check_branch
      %11 = sbr.rel (0) target = $region5
    $region4: #{tpu_custom_call.1} parent=1 // pred_region
      %13 = vsyncadd [#allocation3], 0
      %s15 = sshll.u32 %s0, 4
      %s16 = int_to_ptr.hbm [resolvable:$true] %s15
      %s17 = sshll.u32 [#allocation2], 4
      %s18 = int_to_ptr.vmem [resolvable:$true] %s17
      %20 = dma.hbm_to_vmem [thread:$0]  %s16, 32, %s18, [#allocation3]
    $region5: #{tpu_custom_call.1} parent=1 // pred_fallthru
      _
    // Predicated region
    $region6: #{tpu_custom_call.1} parent=1 // pred_check
      _
    $region7: #{tpu_custom_call.1} parent=1 // pred_check_branch
      %22 = sbr.rel (0) target = $region9
    $region8: #{tpu_custom_call.1} parent=1 // pred_region
      %24 = vsyncadd [#allocation6], 0
      %s25 = sshll.u32 %s1, 4
      %s26 = int_to_ptr.hbm [resolvable:$true] %s25
      %s27 = sshll.u32 [#allocation5], 4
      %s28 = int_to_ptr.vmem [resolvable:$true] %s27
      %33 = dma.hbm_to_vmem [thread:$0]  %s26, 256, %s28, [#allocation6], 32, 32, 2
    $region9: #{tpu_custom_call.1} parent=1 // pred_fallthru
      _
    // Predicated region
    $region10: #{tpu_custom_call.1} parent=1 // pred_check
      _
    $region11: #{tpu_custom_call.1} parent=1 // pred_check_branch
      %35 = sbr.rel (0) target = $region13
    $region12: #{tpu_custom_call.1} parent=1 // pred_region
      %37 = dma.done [#allocation3], 32
    $region13: #{tpu_custom_call.1} parent=1 // pred_fallthru
      _
    // Predicated region
    $region14: #{tpu_custom_call.1} parent=1 // pred_check
      _
    $region15: #{tpu_custom_call.1} parent=1 // pred_check_branch
      %39 = sbr.rel (0) target = $region17
    $region16: #{tpu_custom_call.1} parent=1 // pred_region
      %41 = dma.done [#allocation6], 256
    $region17: #{tpu_custom_call.1} parent=1 // pred_fallthru
      _
    %v42 = vld [vmem:[#allocation5] sm:$0x3]
    %v43 = vld [vmem:[#allocation5 + $0x2] sm:$0x3]
    %v44 = vld [vmem:[#allocation5 + $0x4] sm:$0x3]
    %v45 = vld [vmem:[#allocation5 + $0x6] sm:$0x3]
    %v46 = vld [vmem:[#allocation5 + $0x8] sm:$0x3]
    %v47 = vld [vmem:[#allocation5 + $0xa] sm:$0x3]
    %v48 = vld [vmem:[#allocation5 + $0xc] sm:$0x3]
    %v49 = vld [vmem:[#allocation5 + $0xe] sm:$0x3]
    %v50 = vld [vmem:[#allocation2] sm:$0x3]
    %v51 = vmul.f32 %v42, %v50
    %v52 = vmul.f32 %v43, %v50
    %v53 = vmul.f32 %v44, %v50
    %v54 = vmul.f32 %v45, %v50
    %v55 = vmul.f32 %v46, %v50
    %v56 = vmul.f32 %v47, %v50
    %v57 = vmul.f32 %v48, %v50
    %v58 = vmul.f32 %v49, %v50
    %vm59 = vcmask 254976
    %v60 = vsel %vm59, %v51, 0.0
    %61 = vadd.xlane.f32.xlu0 %v60
    %v62 = vpop.xlane.xlu0 %61
    %v63 = vsel %vm59, %v52, 0.0
    %64 = vadd.xlane.f32.xlu0 %v63
    %v65 = vpop.xlane.xlu0 %64
    %v66 = vsel %vm59, %v53, 0.0
    %67 = vadd.xlane.f32.xlu0 %v66
    %v68 = vpop.xlane.xlu0 %67
    %v69 = vsel %vm59, %v54, 0.0
    %70 = vadd.xlane.f32.xlu0 %v69
    %v71 = vpop.xlane.xlu0 %70
    %v72 = vsel %vm59, %v55, 0.0
    %73 = vadd.xlane.f32.xlu0 %v72
    %v74 = vpop.xlane.xlu0 %73
    %v75 = vsel %vm59, %v56, 0.0
    %76 = vadd.xlane.f32.xlu0 %v75
    %v77 = vpop.xlane.xlu0 %76
    %v78 = vsel %vm59, %v57, 0.0
    %79 = vadd.xlane.f32.xlu0 %v78
    %v80 = vpop.xlane.xlu0 %79
    %v81 = vsel %vm59, %v58, 0.0
    %82 = vadd.xlane.f32.xlu0 %v81
    %v83 = vpop.xlane.xlu0 %82
    %v92 = vlaneseq
    %v93 = vand.u32 %v92, 127
    %v94 = vperm.slane %v62, %v93
    %v95 = vperm.slane %v65, %v93
    %v96 = vperm.slane %v68, %v93
    %v97 = vperm.slane %v71, %v93
    %v98 = vperm.slane %v74, %v93
    %v99 = vperm.slane %v77, %v93
    %v100 = vperm.slane %v80, %v93
    %v101 = vperm.slane %v83, %v93
    %vm102 = vcmask 1041409
    %v103 = vsel %vm102, %v95, %v94
    %vm104 = vcmask 1042434
    %v105 = vsel %vm104, %v96, %v103
    %vm106 = vcmask 1043459
    %v107 = vsel %vm106, %v97, %v105
    %vm108 = vcmask 1044484
    %v109 = vsel %vm108, %v98, %v107
    %vm110 = vcmask 1045509
    %v111 = vsel %vm110, %v99, %v109
    %vm112 = vcmask 1046534
    %v113 = vsel %vm112, %v100, %v111
    %vm114 = vcmask 1047559
    %v115 = vsel %vm114, %v101, %v113
    %117 = vxpose.xlu0.b32.start [1/16] %v115, 128
    %118 = vxpose.xlu0.b32.cont [2/16] 0.0, 128
    %119 = vxpose.xlu0.b32.cont [3/16] 0.0, 128
    %120 = vxpose.xlu0.b32.cont [4/16] 0.0, 128
    %121 = vxpose.xlu0.b32.cont [5/16] 0.0, 128
    %122 = vxpose.xlu0.b32.cont [6/16] 0.0, 128
    %123 = vxpose.xlu0.b32.cont [7/16] 0.0, 128
    %124 = vxpose.xlu0.b32.cont [8/16] 0.0, 128
    %125 = vxpose.xlu0.b32.cont [9/16] 0.0, 128
    %126 = vxpose.xlu0.b32.cont [10/16] 0.0, 128
    %127 = vxpose.xlu0.b32.cont [11/16] 0.0, 128
    %128 = vxpose.xlu0.b32.cont [12/16] 0.0, 128
    %129 = vxpose.xlu0.b32.cont [13/16] 0.0, 128
    %130 = vxpose.xlu0.b32.cont [14/16] 0.0, 128
    %131 = vxpose.xlu0.b32.cont [15/16] 0.0, 128
    %132 = vxpose.xlu0.b32.end [16/16] 0.0, 128
    %v133 = vpop.trf.xlu0
    %v134 = vpop.trf.xlu0
    %v135 = vpop.trf.xlu0
    %v136 = vpop.trf.xlu0
    %v137 = vpop.trf.xlu0
    %v138 = vpop.trf.xlu0
    %v139 = vpop.trf.xlu0
    %v140 = vpop.trf.xlu0
    %v141 = vpop.trf.xlu0
    %v142 = vpop.trf.xlu0
    %v143 = vpop.trf.xlu0
    %v144 = vpop.trf.xlu0
    %v145 = vpop.trf.xlu0
    %v146 = vpop.trf.xlu0
    %v147 = vpop.trf.xlu0
    %v148 = vpop.trf.xlu0
    %vm149 = vcmask 58368
    %v150 = vsel %vm149, %v133, -inf
    %151 = vmax.xlane.f32.xlu0 %v150
    %v152 = vpop.xlane.xlu0 %151
    %v153 = vsub.f32 %v133, %v152
    %v154 = vmul.f32 %v153, 1.442695
    %v155 = vpow.pop %v154
    %v156 = vsel %vm149, %v155, 0.0
    %157 = vadd.xlane.f32.xlu0 %v156
    %v158 = vpop.xlane.xlu0 %157
    %v159 = vrcp.pop %v158
    %v160 = vmul.f32 %v158, %v159
    %v161 = vsub.f32 1.0, %v160
    %v162 = vmul.f32 %v159, %v161
    %v163 = vadd.f32 %v159, %v162
    %vm164 = vweird.f32 %v158
    %vm165 = vweird.f32 %v159
    %vm166 = vmor %vm164, %vm165
    %v167 = vsel %vm166, %v159, %v163
    %v168 = vand.u32 2147483647, %v158
    %vm169 = vcmp.eq.f32.partialorder %v168, 8.507059e+37
    %v170 = vand.u32 %v158, 2147483648
    %v171 = vor.u32 1.1754944e-38, %v170
    %v172 = vsel %vm169, %v171, %v167
    %v173 = vmul.f32 %v155, %v172
    %174 = vst.msk [vmem:[#allocation7] sm:$0x3] %vm149, %v173
    // Predicated region
    $region18: #{tpu_custom_call.1} parent=1 // pred_check
      _
    $region19: #{tpu_custom_call.1} parent=1 // pred_check_branch
      %176 = sbr.rel (0) target = $region21
    $region20: #{tpu_custom_call.1} parent=1 // pred_region
      %178 = vsyncadd [#allocation4], 0
      %s180 = sshll.u32 [#allocation7], 4
      %s181 = int_to_ptr.vmem [resolvable:$true] %s180
      %s182 = sshll.u32 %s2, 4
      %s183 = int_to_ptr.hbm [resolvable:$true] %s182
      %185 = dma.vmem_to_hbm [thread:$0]  %s181, 32, %s183, [#allocation4]
    $region21: #{tpu_custom_call.1} parent=1 // pred_fallthru
      _
    // Predicated region
    $region22: #{tpu_custom_call.1} parent=1 // pred_check
      _
    $region23: #{tpu_custom_call.1} parent=1 // pred_check_branch
      %187 = sbr.rel (0) target = $region25
    $region24: #{tpu_custom_call.1} parent=1 // pred_region
      %189 = dma.done [#allocation4], 32
    $region25: #{tpu_custom_call.1} parent=1 // pred_fallthru
      _
    %190 = vsyncpa [#allocation3], 1
    %191 = vsyncpa [#allocation6], 1
    %192 = vsyncpa [#allocation4], 1

</llo_original>
